<compile_context>
chip_gen: v7x
topology: tpu7x:2x2x1
jax: 0.10.0
libtpu: 0.0.40
codegen_flags: <defaults>
</compile_context>

<pallas_src>
import jax
import jax.numpy as jnp
from jax import lax
from jax.experimental import pallas as pl
from jax.experimental.pallas import tpu as pltpu

_INV_SQRT2 = 0.7071067811865476      # 1 / sqrt(2)
_SQRT_2_OVER_PI = 0.7978845608028654  # sqrt(2 / pi)


def _round_up(x, m):
    return (x + m - 1) // m * m


def _vmem_capacity_bytes():
    """Per-core VMEM capacity (generation aware), with a conservative fallback."""
    try:
        return int(pltpu.get_tpu_info().vmem_capacity_bytes)
    except Exception:
        return 64 << 20  # v7x-sized fallback: safe on every generation


def _bert_intermediate_kernel_exact(x_ref, w_ref, b_ref, o_ref):
    # x_ref: (tm, H)   w_ref: (H, tn)   b_ref: (1, tn)   o_ref: (tm, tn)
    y = jnp.dot(x_ref[...], w_ref[...], preferred_element_type=jnp.float32)
    y = y + b_ref[...].astype(jnp.float32)
    # Exact erf GELU (BERT default, matches ACT2FN["gelu"]):
    #   0.5 * x * (1 + erf(x / sqrt(2)))
    # NOTE: lax.erf lowers to a VPU polynomial (NOT a single EUP op); on
    # v6e/v7x the tanh variant below keeps the epilogue on the EUP slot.
    g = 0.5 * y * (1.0 + lax.erf(y * _INV_SQRT2))
    o_ref[...] = g.astype(o_ref.dtype)


def _bert_intermediate_kernel_tanh(x_ref, w_ref, b_ref, o_ref):
    y = jnp.dot(x_ref[...], w_ref[...], preferred_element_type=jnp.float32)
    y = y + b_ref[...].astype(jnp.float32)
    # tanh GELU ("gelu_new"); tanh is an EUP instruction, hidden under the MXU.
    g = 0.5 * y * (1.0 + jnp.tanh(_SQRT_2_OVER_PI * (y + 0.044715 * y * y * y)))
    o_ref[...] = g.astype(o_ref.dtype)


def prepare_bert_intermediate_params(weight, bias, *, param_dtype=None, lane=128):
    """One-time parameter prep (transpose + lane pad). Call once, reuse every step.

    weight: PyTorch-layout [I, H]; bias: [I].
    param_dtype: optional storage dtype for the weight (e.g. jnp.bfloat16 --
    halves weight HBM traffic and enables the fast bf16 MXU path when the
    activations are bf16 too). The bias is always stored in f32 (added in f32).
    Returns (w_t [H, I_pad], bias2d [1, I_pad], out_features=I).
    """
    I, H = weight.shape
    i_pad = _round_up(I, lane)
    w_t = jnp.asarray(weight).T  # [H, I]
    if param_dtype is not None:
        w_t = w_t.astype(param_dtype)
    b = jnp.asarray(bias).astype(jnp.float32)
    if i_pad != I:
        w_t = jnp.pad(w_t, ((0, 0), (0, i_pad - I)))
        b = jnp.pad(b, (0, i_pad - I))
    return w_t, b.reshape(1, i_pad), I


def bert_intermediate(hidden_states, w_t, bias2d, *, out_features=None,
                      tm=None, tn=None, approx_gelu=False):
    """hidden_states: [B, S, H]; w_t: [H, I_pad]; bias2d: [1, I_pad] (f32)."""
    B, S, H = hidden_states.shape
    h_w, i_pad = w_t.shape
    assert h_w == H, "weight / activation hidden size mismatch"
    if out_features is None:
        out_features = i_pad

    x_dtype = hidden_states.dtype
    xb = jnp.dtype(x_dtype).itemsize
    wb = jnp.dtype(w_t.dtype).itemsize
    sublane = 16 if xb == 2 else 8  # bf16 packs 2 rows / sublane

    M = B * S
    x2d = hidden_states.reshape(M, H)

    vmem_cap = _vmem_capacity_bytes()
    budget = (vmem_cap * 11) // 20       # ~0.55x capacity for kernel buffers
    vmem_ceiling = (vmem_cap * 3) // 4   # leave headroom for Mosaic scratch

    # --- Row (M) tile: big fixed tile, sublane aligned. Ragged M is handled by
    # Pallas partial blocks (masked edge loads/stores) -- no host-side pad/slice.
    if tm is None:
        tm = 1024 if vmem_cap >= (96 << 20) else 512
    tm = max(sublane, min(_round_up(tm, sublane), _round_up(M, sublane)))
    # Keep at least two row tiles when possible so the megacore-sharded axis has
    # work on v7x (one extra cheap grid step on single-TC v5e/v6e).
    if pl.cdiv(M, tm) < 2 and M >= 2 * sublane:
        tm = _round_up(pl.cdiv(M, 2), sublane)

    def est_bytes(tn_, resident_):
        wbuf = 1 if resident_ else 2
        return (2 * tm * H * xb          # activation double buffer
                + wbuf * H * tn_ * wb    # weight (single buffer when resident)
                + wbuf * tn_ * 4         # bias (f32)
                + 2 * tm * tn_ * xb      # output double buffer
                + tm * tn_ * 4)          # f32 matmul result / epilogue temporaries

    # --- N (intermediate) tile: keep the whole weight resident when it fits the
    # generation-aware budget; otherwise stream wide, lane-dense column blocks
    # whose width divides i_pad (never asserts for awkward sizes like I=1280).
    def largest_divisor_tile(cap):
        best = 128
        for k in range(1, i_pad // 128 + 1):
            t = 128 * k
            if i_pad % t == 0 and t <= cap and est_bytes(t, False) <= budget:
                best = t
        return best

    if tn is None:
        if est_bytes(i_pad, True) <= budget:
            tn = i_pad
        else:
            target = 2048 if vmem_cap >= (96 << 20) else 1024
            tn = largest_divisor_tile(target)
    else:
        tn = min(_round_up(tn, 128), i_pad)
        while i_pad % tn != 0:
            tn -= 128

    resident = (tn == i_pad)
    nm = pl.cdiv(M, tm)
    nn = i_pad // tn

    # --- Grid ordering: put outer the axis that minimizes re-streamed HBM bytes;
    # when one axis is trivial, put the non-trivial one outer (v7x megacore).
    if nn == 1 or nm == 1:
        m_outer = nm >= nn
    else:
        extra_m_outer = (nm - 1) * i_pad * H * wb   # weight re-reads (M outer)
        extra_n_outer = (nn - 1) * M * H * xb       # activation re-reads (N outer)
        m_outer = extra_m_outer < extra_n_outer

    # Resident weight/bias: block index never changes -> single buffer
    # (saves H*i_pad*wb of VMEM vs the default double buffer).
    wspec_kwargs = {"pipeline_mode": pl.Buffered(1)} if resident else {}

    if m_outer:
        grid = (nm, nn)
        x_spec = pl.BlockSpec((tm, H), lambda i, j: (i, 0))
        w_spec = pl.BlockSpec((H, tn), lambda i, j: (0, j), **wspec_kwargs)
        b_spec = pl.BlockSpec((1, tn), lambda i, j: (0, j), **wspec_kwargs)
        o_spec = pl.BlockSpec((tm, tn), lambda i, j: (i, j))
    else:
        grid = (nn, nm)
        x_spec = pl.BlockSpec((tm, H), lambda j, i: (i, 0))
        w_spec = pl.BlockSpec((H, tn), lambda j, i: (0, j), **wspec_kwargs)
        b_spec = pl.BlockSpec((1, tn), lambda j, i: (0, j), **wspec_kwargs)
        o_spec = pl.BlockSpec((tm, tn), lambda j, i: (i, j))

    vmem_bytes = int(min(max(est_bytes(tn, resident) + (6 << 20), 16 << 20),
                         vmem_ceiling))

    cost = pl.CostEstimate(
        flops=2 * M * H * i_pad,
        transcendentals=M * i_pad,
        bytes_accessed=M * H * xb + H * i_pad * wb + i_pad * 4 + M * i_pad * xb,
    )

    kernel = (_bert_intermediate_kernel_tanh if approx_gelu
              else _bert_intermediate_kernel_exact)

    out = pl.pallas_call(
        kernel,
        out_shape=jax.ShapeDtypeStruct((M, i_pad), x_dtype),
        grid_spec=pltpu.PrefetchScalarGridSpec(
            num_scalar_prefetch=0,
            grid=grid,
            in_specs=[x_spec, w_spec, b_spec],
            out_specs=o_spec,
        ),
        compiler_params=pltpu.CompilerParams(
            dimension_semantics=("parallel", "parallel"),
            vmem_limit_bytes=vmem_bytes,
        ),
        cost_estimate=cost,
    )(x2d, w_t, bias2d)

    if out_features != i_pad:
        out = out[:, :out_features]  # only when I is not already 128-aligned
    return out.reshape(B, S, out_features)


def _reference(hidden_states, weight, bias):
    y = jnp.einsum("bsh,ih->bsi", hidden_states, weight) + bias
    return 0.5 * y * (1.0 + lax.erf(y * _INV_SQRT2))


# TODO(synk): only the "gelu" (exact erf, BERT default) and "gelu_new" (tanh)
# activations are implemented; arbitrary config.hidden_act callables are not.

if __name__ == "__main__":
    # Small BERT-like config: hidden_size=32, intermediate_size=128, B=2, S=8.
    B, S, H, I = 2, 8, 32, 128

    key = jax.random.PRNGKey(0)
    k_x, k_w, k_b = jax.random.split(key, 3)

    hidden_states = jax.random.normal(k_x, (B, S, H), dtype=jnp.float32)
    # Deterministic "init" of Linear(H, I): weight [I, H], bias [I] (torch layout).
    weight = jax.random.normal(k_w, (I, H), dtype=jnp.float32) * (1.0 / jnp.sqrt(H))
    bias = jax.random.normal(k_b, (I,), dtype=jnp.float32) * 0.02

    # One-time param prep (transpose + lane pad), then the kernel call.
    w_t, b2d, out_features = prepare_bert_intermediate_params(weight, bias)

    out = bert_intermediate(hidden_states, w_t, b2d, out_features=out_features)
    out = jax.block_until_ready(out)
    ref = _reference(hidden_states, weight, bias)
    assert out.shape == (B, S, I)
    assert jnp.allclose(out, ref, atol=1e-5, rtol=1e-5), "mismatch vs reference"

    # Ragged batch*seq (M not a multiple of the row tile): exercises the Pallas
    # partial-block path (masked edge load/store, no host-side pad / slice).
    hs_ragged = jax.random.normal(k_x, (3, 7, H), dtype=jnp.float32)
    out2 = bert_intermediate(hs_ragged, w_t, b2d, out_features=out_features, tm=16)
    out2 = jax.block_until_ready(out2)
    ref2 = _reference(hs_ragged, weight, bias)
    assert out2.shape == (3, 7, I)
    assert jnp.allclose(out2, ref2, atol=1e-5, rtol=1e-5), "ragged mismatch"

    # bf16 path: bf16 activations + bf16 weight storage, f32 accumulation.
    w_t16, b2d16, _ = prepare_bert_intermediate_params(
        weight, bias, param_dtype=jnp.bfloat16)
    out3 = bert_intermediate(hidden_states.astype(jnp.bfloat16), w_t16, b2d16,
                             out_features=out_features)
    out3 = jax.block_until_ready(out3)
    assert out3.shape == (B, S, I) and out3.dtype == jnp.bfloat16
    assert jnp.allclose(out3.astype(jnp.float32), ref, atol=5e-2, rtol=5e-2), \
        "bf16 mismatch"

    print("KERNEL_OK")
</pallas_src>

<mosaic_0001>
module attributes {stable_mosaic.version = 11 : i64} {
  func.func @_bert_intermediate_kernel_exact(%arg0: i32, %arg1: i32, %arg2: memref<8x32xf32, #tpu.memory_space<vmem>>, %arg3: memref<32x128xf32, #tpu.memory_space<vmem>>, %arg4: memref<1x128xf32, #tpu.memory_space<vmem>>, %arg5: memref<8x128xf32, #tpu.memory_space<vmem>>) attributes {dimension_semantics = [#tpu.dimension_semantics<parallel>, #tpu.dimension_semantics<parallel>], iteration_bounds = array<i64: 2, 1>, scalar_prefetch = 0 : i64, scratch_operands = 0 : i64, tpu.core_type = #tpu.core_type<tc>, window_params = [{transform_indices = @transform_0, window_bounds = array<i64: 8, 32>}, {pipeline_mode = #tpu.pipeline_mode<synchronous>, transform_indices = @transform_1, window_bounds = array<i64: 32, 128>}, {pipeline_mode = #tpu.pipeline_mode<synchronous>, transform_indices = @transform_2, window_bounds = array<i64: 1, 128>}, {transform_indices = @transform_3, window_bounds = array<i64: 8, 128>}]} {
    %c0 = arith.constant 0 : index
    %c0_0 = arith.constant 0 : index
    %0 = vector.load %arg2[%c0, %c0_0] : memref<8x32xf32, #tpu.memory_space<vmem>>, vector<8x32xf32>
    %c0_1 = arith.constant 0 : index
    %c0_2 = arith.constant 0 : index
    %1 = vector.load %arg3[%c0_1, %c0_2] : memref<32x128xf32, #tpu.memory_space<vmem>>, vector<32x128xf32>
    %cst = arith.constant dense<0.000000e+00> : vector<8x128xf32>
    %2 = tpu.matmul %0, %1, %cst {dimension_numbers = #tpu.dot_dimension_numbers<[1], [0], [0], [1], [0, 0, 1, 1], [], []>} : vector<8x32xf32>, vector<32x128xf32>, vector<8x128xf32> -> vector<8x128xf32>
    %c0_3 = arith.constant 0 : index
    %c0_4 = arith.constant 0 : index
    %3 = vector.load %arg4[%c0_3, %c0_4] : memref<1x128xf32, #tpu.memory_space<vmem>>, vector<1x128xf32>
    %4 = vector.broadcast %3 : vector<1x128xf32> to vector<8x128xf32>
    %5 = arith.addf %2, %4 : vector<8x128xf32>
    %cst_5 = arith.constant 5.000000e-01 : f32
    %6 = vector.broadcast %cst_5 : f32 to vector<8x128xf32>
    %7 = arith.mulf %6, %5 : vector<8x128xf32>
    %cst_6 = arith.constant 0.707106769 : f32
    %8 = vector.broadcast %cst_6 : f32 to vector<8x128xf32>
    %9 = arith.mulf %5, %8 : vector<8x128xf32>
    %10 = math.erf %9 : vector<8x128xf32>
    %cst_7 = arith.constant 1.000000e+00 : f32
    %11 = vector.broadcast %cst_7 : f32 to vector<8x128xf32>
    %12 = arith.addf %11, %10 : vector<8x128xf32>
    %13 = arith.mulf %7, %12 : vector<8x128xf32>
    %c0_8 = arith.constant 0 : index
    %c0_9 = arith.constant 0 : index
    %14 = vector.load %arg5[%c0_8, %c0_9] : memref<8x128xf32, #tpu.memory_space<vmem>>, vector<8x128xf32>
    tpu.vector_store %arg5[%c0_8, %c0_9], %13 {strides = array<i32>} : memref<8x128xf32, #tpu.memory_space<vmem>>, vector<8x128xf32>,
    return
  }
  func.func @transform_0(%arg0: i32, %arg1: i32) -> (i32, i32) {
    %c0_i32 = arith.constant 0 : i32
    %c0_i32_0 = arith.constant 0 : i32
    return %arg0, %c0_i32 : i32, i32
  }
  func.func @transform_1(%arg0: i32, %arg1: i32) -> (i32, i32) {
    %c0_i32 = arith.constant 0 : i32
    %c0_i32_0 = arith.constant 0 : i32
    return %c0_i32, %arg1 : i32, i32
  }
  func.func @transform_2(%arg0: i32, %arg1: i32) -> (i32, i32) {
    %c0_i32 = arith.constant 0 : i32
    %c0_i32_0 = arith.constant 0 : i32
    return %c0_i32, %arg1 : i32, i32
  }
  func.func @transform_3(%arg0: i32, %arg1: i32) -> (i32, i32) {
    %c0_i32 = arith.constant 0 : i32
    return %arg0, %arg1 : i32, i32
  }
}

</mosaic_0001>

<llo_original>
// kernel: tpu_custom_call.1
$region0: #{tpu_custom_call.1}
  #allocation0 [shape = 'u32[]', space=smem, size = 0x4, offset = 0x4, fixed_abs, tag = 'smem constant byte address 0x4 - core index']
  #allocation1 [shape = 'u32[144,128]{1,0:T(1,128)}', space=vmem, size = 0x12000, scoped, tag = 'internal scratch']
  %s0 = inlined_call_operand.hbm [shape: f32[16,32], index: 0, kind: input, shape index: {}]
  %s1 = inlined_call_operand.hbm [shape: f32[32,128], index: 1, kind: input, shape index: {}]
  %s2 = inlined_call_operand.vmem [shape: f32[1,128], index: 2, kind: input, shape index: {}]
  %s3 = inlined_call_operand.hbm [shape: f32[16,128], index: 3, kind: output, shape index: {}]
  %s4 = sld [smem:[#allocation0]]
  $region53: #{tpu_custom_call.1} parent=0
    _
  %s6 = ssub.s32 1, %s4
  %s7 = scalar_select 0, %s6, %s4
  $region1: #{tpu_custom_call.1} parent=0
    #allocation2 [shape = 'u8[8192]{0}', space=vmem, size = 0x2000, scoped, tag = 'input window, operand 0']
    #allocation3 [shape = 's32[2]{0}', space=sflag, size = 0x8, scoped, tag = 'scoped memory for tpu_custom_call.1']
    #allocation4 [shape = 's32[2]{0}', space=sflag, size = 0x8, scoped, tag = 'scoped memory for tpu_custom_call.1']
    #allocation5 [shape = 'u8[16384]{0}', space=vmem, size = 0x4000, scoped, tag = 'input window, operand 1, single buffered']
    #allocation6 [shape = 's32[1]{0}', space=sflag, size = 0x4, scoped, tag = 'scoped memory for tpu_custom_call.1']
    #allocation7 [shape = 'u8[8192]{0}', space=vmem, size = 0x2000, scoped, tag = 'output window, operand 0']
    %8 = vsyncpa [#allocation3], 0
    %s9 = scalar_lea.sflag [#allocation3], 1
    %10 = vsyncpa %s9, 0
    %11 = vsyncpa [#allocation6], 0
    %12 = vsyncpa [#allocation4], 0
    %s13 = scalar_lea.sflag [#allocation4], 1
    %14 = vsyncpa %s13, 0
    loop: start=0, step=1, limit=4
    $region2: #{tpu_custom_call.1} parent=1 // loop_pre_header
      _
    $region3: #{tpu_custom_call.1} parent=1 // loop_header
      %s16 = sphi 0, %s20
      %p17 = scmp.ge.s32.totalorder %s16, 4
      %s23 = sphi 0, %s35
      %s24 = sphi 0, %s31
      %s25 = sphi 0, %s23
      %s26 = sphi 0, %s24
      %s27 = sphi 0, %s25
      %s28 = sphi 0, %s26
      %s38 = sphi 0, %s40
      %s41 = sphi 0, %s38
      %s42 = sphi 0, %s41
      %s58 = sphi 0, %s42
      %s64 = sphi 0, %s66
      %s67 = sphi 0, %s64
      %s68 = sphi 0, %s67
      %s84 = sphi 0, %s68
      %s90 = sphi 0, %s92
      %s93 = sphi 0, %s90
      %s94 = sphi 0, %s93
      %s110 = sphi 0, %s94
      %s118 = sphi 0, %s120
      %s121 = sphi 0, %s118
      %s122 = sphi 0, %s121
      %s138 = sphi 0, %s122
    $region4: #{tpu_custom_call.1} parent=1 // loop_header_branch
      %19 = sbr.rel (%p17) target = $region8
    $region5: #{tpu_custom_call.1} parent=1 // loop_body
      %s21 = ssub.s32 %s16, 1
      %s22 = ssub.s32 %s16, 2
      %s29 = sadd.s32 1, %s24
      %p30 = scmp.ge.s32.totalorder %s29, 1
      %s31 = scalar_select %p30, 0, %s29
      %s32 = sadd.s32 1, %s23
      %s33 = scalar_select %p30, %s32, %s23
      %p34 = scmp.ge.s32.totalorder %s33, 2
      %s35 = scalar_select %p34, 0, %s33
      %s36 = ssub.s32 %s23, %s35
      %p37 = scmp.eq.s32.totalorder %s36, 0
      %s39 = sadd.s32 %s38, 1
      %s40 = scalar_select %p37, %s38, %s39
      %p43 = pneg %p37
      %p44 = scmp.eq.s32.totalorder %s16, 1
      %p45 = por %p43, %p44
      %p46 = scmp.ne.s32.totalorder %s38, %s41
      %p47 = scmp.eq.s32.totalorder %s16, 0
      %p48 = por %p46, %p47
      %p49 = scmp.ne.s32.totalorder %s38, %s41
      %p50 = scmp.eq.s32.totalorder %s21, 1
      %p51 = por %p49, %p50
      %p52 = scmp.ne.s32.totalorder %s41, %s42
      %p53 = scmp.eq.s32.totalorder %s21, 0
      %p54 = por %p52, %p53
      %p55 = scmp.ne.s32.totalorder %s41, %s42
      %p56 = scmp.eq.s32.totalorder %s22, 1
      %p57 = por %p55, %p56
      %p59 = scmp.ne.s32.totalorder %s42, %s58
      %p60 = scmp.eq.s32.totalorder %s22, 0
      %p61 = por %p59, %p60
      %s62 = ssub.s32 %s24, %s31
      %p63 = scmp.eq.s32.totalorder %s62, 0
      %s65 = sadd.s32 %s64, 1
      %s66 = scalar_select %p63, %s64, %s65
      %p69 = pneg %p63
      %p70 = scmp.eq.s32.totalorder %s16, 1
      %p71 = por %p69, %p70
      %p72 = scmp.ne.s32.totalorder %s64, %s67
      %p73 = scmp.eq.s32.totalorder %s16, 0
      %p74 = por %p72, %p73
      %p75 = scmp.ne.s32.totalorder %s64, %s67
      %p76 = scmp.eq.s32.totalorder %s21, 1
      %p77 = por %p75, %p76
      %p78 = scmp.ne.s32.totalorder %s67, %s68
      %p79 = scmp.eq.s32.totalorder %s21, 0
      %p80 = por %p78, %p79
      %p81 = scmp.ne.s32.totalorder %s67, %s68
      %p82 = scmp.eq.s32.totalorder %s22, 1
      %p83 = por %p81, %p82
      %p85 = scmp.ne.s32.totalorder %s68, %s84
      %p86 = scmp.eq.s32.totalorder %s22, 0
      %p87 = por %p85, %p86
      %s88 = ssub.s32 %s24, %s31
      %p89 = scmp.eq.s32.totalorder %s88, 0
      %s91 = sadd.s32 %s90, 1
      %s92 = scalar_select %p89, %s90, %s91
      %p95 = pneg %p89
      %p96 = scmp.eq.s32.totalorder %s16, 1
      %p97 = por %p95, %p96
      %p98 = scmp.ne.s32.totalorder %s90, %s93
      %p99 = scmp.eq.s32.totalorder %s16, 0
      %p100 = por %p98, %p99
      %p101 = scmp.ne.s32.totalorder %s90, %s93
      %p102 = scmp.eq.s32.totalorder %s21, 1
      %p103 = por %p101, %p102
      %p104 = scmp.ne.s32.totalorder %s93, %s94
      %p105 = scmp.eq.s32.totalorder %s21, 0
      %p106 = por %p104, %p105
      %p107 = scmp.ne.s32.totalorder %s93, %s94
      %p108 = scmp.eq.s32.totalorder %s22, 1
      %p109 = por %p107, %p108
      %p111 = scmp.ne.s32.totalorder %s94, %s110
      %p112 = scmp.eq.s32.totalorder %s22, 0
      %p113 = por %p111, %p112
      %s114 = ssub.s32 %s23, %s35
      %s115 = ssub.s32 %s24, %s31
      %s116 = sor.u32 %s114, %s115
      %p117 = scmp.eq.s32.totalorder %s116, 0
      %s119 = sadd.s32 %s118, 1
      %s120 = scalar_select %p117, %s118, %s119
      %p123 = pneg %p117
      %p124 = scmp.eq.s32.totalorder %s16, 1
      %p125 = por %p123, %p124
      %p126 = scmp.ne.s32.totalorder %s118, %s121
      %p127 = scmp.eq.s32.totalorder %s16, 0
      %p128 = por %p126, %p127
      %p129 = scmp.ne.s32.totalorder %s118, %s121
      %p130 = scmp.eq.s32.totalorder %s21, 1
      %p131 = por %p129, %p130
      %p132 = scmp.ne.s32.totalorder %s121, %s122
      %p133 = scmp.eq.s32.totalorder %s21, 0
      %p134 = por %p132, %p133
      %p135 = scmp.ne.s32.totalorder %s121, %s122
      %p136 = scmp.eq.s32.totalorder %s22, 1
      %p137 = por %p135, %p136
      %p139 = scmp.ne.s32.totalorder %s122, %s138
      %p140 = scmp.eq.s32.totalorder %s22, 0
      %p141 = por %p139, %p140
      %p142 = scmp.le.s32.totalorder 1, %s16
      %p143 = scmp.lt.s32.totalorder %s16, 3
      %p144 = pnand %p142, %p143
      %p145 = pneg %p144
      // Predicated region
      $region9: #{tpu_custom_call.1} parent=5 // pred_check
        _
      $region10: #{tpu_custom_call.1} parent=5 // pred_check_branch
        %147 = sbr.rel (%p144) target = $region12
      $region11: #{tpu_custom_call.1} parent=5 // pred_region
        %s148 = ssub.s32 %s16, 1
        // Predicated region
        $region13: #{tpu_custom_call.1} parent=11 // pred_check
          %p149 = pneg %p80
        $region14: #{tpu_custom_call.1} parent=11 // pred_check_branch
          %151 = sbr.rel (%p149) target = $region16
        $region15: #{tpu_custom_call.1} parent=11 // pred_region
          %s153 = ssub.s32 512, 512
          %154 = vsyncadd [#allocation6], %s153
          %s155 = smul.addr %s26, 128
          %s156 = scalar_lea.hbm %s1, %s155
          %s157 = sshll.u32 [#allocation5], 4
          %s158 = int_to_ptr.vmem [resolvable:$true] %s157
          %163 = dma.hbm_to_vmem [thread:$0]  %s156, 512, %s158, [#allocation6], 128, 128, 8
        $region16: #{tpu_custom_call.1} parent=11 // pred_fallthru
          _
        // Predicated region
        $region17: #{tpu_custom_call.1} parent=11 // pred_check
          %p164 = pneg %p106
        $region18: #{tpu_custom_call.1} parent=11 // pred_check_branch
          %166 = sbr.rel (%p164) target = $region20
        $region19: #{tpu_custom_call.1} parent=11 // pred_region
          %p167 = scmp.lt.s32.totalorder %s26, 0
          %s168 = scalar_select %p167, %s26, 0
          %s169 = scalar_lea.vmem %s2, %s168
        $region20: #{tpu_custom_call.1} parent=11 // pred_fallthru
          _
      $region12: #{tpu_custom_call.1} parent=5 // pred_fallthru
        _
      %p170 = scmp.lt.s32.totalorder %s16, 2
      // Predicated region
      $region21: #{tpu_custom_call.1} parent=5 // pred_check
        %p171 = pneg %p170
      $region22: #{tpu_custom_call.1} parent=5 // pred_check_branch
        %173 = sbr.rel (%p171) target = $region24
      $region23: #{tpu_custom_call.1} parent=5 // pred_region
        // Predicated region
        $region25: #{tpu_custom_call.1} parent=23 // pred_check
          %p174 = pneg %p48
        $region26: #{tpu_custom_call.1} parent=23 // pred_check_branch
          %176 = sbr.rel (%p174) target = $region28
        $region27: #{tpu_custom_call.1} parent=23 // pred_region
          %s177 = sand.u32 %s38, 1
          %s178 = scalar_lea.sflag [#allocation3], %s177
          %s179 = sand.u32 %s38, 1
          %s180 = smul.addr %s179, 8
          %s181 = scalar_lea.vmem [#allocation2], %s180
          %s183 = ssub.s32 128, 128
          %184 = vsyncadd %s178, %s183
          %s185 = smul.addr %s23, 128
          %s186 = scalar_lea.hbm %s0, %s185
          %s188 = sshll.u32 %s181, 4
          %s189 = int_to_ptr.vmem [resolvable:$true] %s188
          %191 = dma.hbm_to_vmem [thread:$0]  %s186, 128, %s189, %s178
        $region28: #{tpu_custom_call.1} parent=23 // pred_fallthru
          _
      $region24: #{tpu_custom_call.1} parent=5 // pred_fallthru
        _
      %p192 = scmp.le.s32.totalorder 1, %s16
      %p193 = scmp.lt.s32.totalorder %s16, 3
      %p194 = pnand %p192, %p193
      %p195 = pneg %p194
      // Predicated region
      $region29: #{tpu_custom_call.1} parent=5 // pred_check
        _
      $region30: #{tpu_custom_call.1} parent=5 // pred_check_branch
        %197 = sbr.rel (%p194) target = $region32
      $region31: #{tpu_custom_call.1} parent=5 // pred_region
        %s198 = ssub.s32 %s16, 1
        %s199 = sand.u32 %s41, 1
        %s200 = scalar_lea.sflag [#allocation3], %s199
        %s201 = sand.u32 %s41, 1
        %s202 = smul.addr %s201, 8
        %s203 = scalar_lea.vmem [#allocation2], %s202
        // Predicated region
        $region33: #{tpu_custom_call.1} parent=31 // pred_check
          %p204 = pneg %p54
        $region34: #{tpu_custom_call.1} parent=31 // pred_check_branch
          %206 = sbr.rel (%p204) target = $region36
        $region35: #{tpu_custom_call.1} parent=31 // pred_region
          %207 = dma.done %s200, 128
        $region36: #{tpu_custom_call.1} parent=31 // pred_fallthru
          _
        // Predicated region
        $region37: #{tpu_custom_call.1} parent=31 // pred_check
          %p208 = pneg %p80
        $region38: #{tpu_custom_call.1} parent=31 // pred_check_branch
          %210 = sbr.rel (%p208) target = $region40
        $region39: #{tpu_custom_call.1} parent=31 // pred_region
          %211 = dma.done [#allocation6], 512
        $region40: #{tpu_custom_call.1} parent=31 // pred_fallthru
          _
        %s212 = sand.u32 %s41, 1
        %s213 = scalar_lea.sflag [#allocation3], %s212
        %s214 = sand.u32 %s41, 1
        %s215 = smul.addr %s214, 8
        %s216 = scalar_lea.vmem [#allocation2], %s215
        %p217 = pneg %p54
        %p218 = pneg %p51
        %p219 = pneg %p80
        %p220 = pneg %p77
        %p221 = scmp.lt.s32.totalorder %s26, 0
        %s222 = scalar_select %p221, %s26, 0
        %s223 = scalar_lea.vmem %s2, %s222
        %p224 = pneg %p106
        %p225 = pneg %p103
        %p226 = pneg %p134
        %p227 = pneg %p131
        %s228 = sand.u32 %s121, 1
        %s229 = scalar_lea.sflag [#allocation4], %s228
        %s230 = sand.u32 %s121, 1
        %s231 = smul.addr %s230, 8
        %s232 = scalar_lea.vmem [#allocation7], %s231
        %p233 = scmp.lt.s32.totalorder %s26, 0
        %s234 = scalar_select %p233, %s26, 0
        %s235 = scalar_lea.vmem %s2, %s234
        %v236 = vld [vmem:[%s203] sm:$0xff]
        %v237 = vld [vmem:[#allocation5] sm:$0xff]
        %v238 = vld [vmem:[#allocation5 + $0x8] sm:$0xff]
        %v239 = vld [vmem:[#allocation5 + $0x10] sm:$0xff]
        %v240 = vld [vmem:[#allocation5 + $0x18] sm:$0xff]
        %v241 = vld [vmem:[%s235] sm:$0x1]
        %v243 = vlaneseq
        %v244 = vshrl.u32 %v243, 7
        %v245 = vsub.s32 0, %v244
        %v246 = vrot.slane %v241, %v245
        %vm248 = vcmask 261120
        %v250 = vsel %vm248, %v236, 0
        %252 = vmatprep.subr.mxu0 0.0
        %253 = vmatpush1.msra.mxu0 %v237
        %254 = vmatprep.subr.mxu0 0.0
        %255 = vmatpush1.msra.mxu0 %v238
        %256 = vmatprep.subr.mxu0 0.0
        %257 = vmatpush1.msra.mxu0 %v239
        %258 = vmatprep.subr.mxu0 0.0
        %259 = vmatpush1.msra.mxu0 %v240
        %260 = vmatprep.subr.mxu0 0.0
        %261 = vmatpush1.msra.mxu0 0.0
        %262 = vmatprep.subr.mxu0 0.0
        %263 = vmatpush1.msra.mxu0 0.0
        %264 = vmatprep.subr.mxu0 0.0
        %265 = vmatpush1.msra.mxu0 0.0
        %266 = vmatprep.subr.mxu0 0.0
        %267 = vmatpush1.msra.mxu0 0.0
        %268 = vmatprep.subr.mxu0 0.0
        %269 = vmatpush1.msra.mxu0 0.0
        %270 = vmatprep.subr.mxu0 0.0
        %271 = vmatpush1.msra.mxu0 0.0
        %272 = vmatprep.subr.mxu0 0.0
        %273 = vmatpush1.msra.mxu0 0.0
        %274 = vmatprep.subr.mxu0 0.0
        %275 = vmatpush1.msra.mxu0 0.0
        %276 = vmatprep.subr.mxu0 0.0
        %277 = vmatpush1.msra.mxu0 0.0
        %278 = vmatprep.subr.mxu0 0.0
        %279 = vmatpush1.msra.mxu0 0.0
        %280 = vmatprep.subr.mxu0 0.0
        %281 = vmatpush1.msra.mxu0 0.0
        %282 = vmatprep.subr.mxu0 0.0
        %283 = vmatpush1.msra.mxu0 0.0
        %284 = vmatprep.subr.mxu0 0.0
        %285 = vmatpush1.msra.mxu0 0.0
        %286 = vmatprep.subr.mxu0 0.0
        %287 = vmatpush1.msra.mxu0 0.0
        %288 = vmatprep.subr.mxu0 0.0
        %289 = vmatpush1.msra.mxu0 0.0
        %290 = vmatprep.subr.mxu0 0.0
        %291 = vmatpush1.msra.mxu0 0.0
        %292 = vmatprep.subr.mxu0 0.0
        %293 = vmatpush1.msra.mxu0 0.0
        %294 = vmatprep.subr.mxu0 0.0
        %295 = vmatpush1.msra.mxu0 0.0
        %296 = vmatprep.subr.mxu0 0.0
        %297 = vmatpush1.msra.mxu0 0.0
        %298 = vmatprep.subr.mxu0 0.0
        %299 = vmatpush1.msra.mxu0 0.0
        %300 = vmatprep.subr.mxu0 0.0
        %301 = vmatpush1.msra.mxu0 0.0
        %302 = vmatprep.subr.mxu0 0.0
        %303 = vmatpush1.msra.mxu0 0.0
        %304 = vmatprep.subr.mxu0 0.0
        %305 = vmatpush1.msra.mxu0 0.0
        %306 = vmatprep.subr.mxu0 0.0
        %307 = vmatpush1.msra.mxu0 0.0
        %308 = vmatprep.subr.mxu0 0.0
        %309 = vmatpush1.msra.mxu0 0.0
        %310 = vmatprep.subr.mxu0 0.0
        %311 = vmatpush1.msra.mxu0 0.0
        %312 = vmatprep.subr.mxu0 0.0
        %313 = vmatpush1.msra.mxu0 0.0
        %314 = vmatprep.subr.mxu0 0.0
        %315 = vmatpush1.msra.mxu0 0.0
        %316 = vmatprep.mubr.f32.mxu0 0.0
        %317 = vmatmul.mubr.f32.gmra.mrb[0].mxu0 %v250
        %v318 = vpop.f32.mrb[0].mxu0
        %v319 = vadd.f32 %v246, %v318
        %v320 = vpop.f32.mrb[0].mxu0
        %321 = vdwg.mxu0
        %v322 = vmul.f32 %v319, 0.5
        %v323 = vmul.f32 %v319, 0.70710677
        %v324 = verf.f32.pop %v323
        %v325 = vadd.f32 %v324, 1.0
        %v326 = vmul.f32 %v322, %v325
        %327 = vst [vmem:[%s232] sm:$0xff] %v326
        %s328 = sand.u32 %s121, 1
        %s329 = scalar_lea.sflag [#allocation4], %s328
        %s330 = sand.u32 %s121, 1
        %s331 = smul.addr %s330, 8
        %s332 = scalar_lea.vmem [#allocation7], %s331
        // Predicated region
        $region41: #{tpu_custom_call.1} parent=31 // pred_check
          %p333 = pneg %p131
        $region42: #{tpu_custom_call.1} parent=31 // pred_check_branch
          %335 = sbr.rel (%p333) target = $region44
        $region43: #{tpu_custom_call.1} parent=31 // pred_region
          %s337 = ssub.s32 128, 128
          %338 = vsyncadd %s329, %s337
          %s339 = sadd.s32 %s26, %s25
          %s340 = smul.addr %s339, 128
          %s341 = scalar_lea.hbm %s3, %s340
          %s343 = sshll.u32 %s332, 4
          %s344 = int_to_ptr.vmem [resolvable:$true] %s343
          %346 = dma.vmem_to_hbm [thread:$0]  %s344, 128, %s341, %s329
        $region44: #{tpu_custom_call.1} parent=31 // pred_fallthru
          _
      $region32: #{tpu_custom_call.1} parent=5 // pred_fallthru
        _
      %p347 = scmp.le.s32.totalorder 2, %s16
      // Predicated region
      $region45: #{tpu_custom_call.1} parent=5 // pred_check
        %p348 = pneg %p347
      $region46: #{tpu_custom_call.1} parent=5 // pred_check_branch
        %350 = sbr.rel (%p348) target = $region48
      $region47: #{tpu_custom_call.1} parent=5 // pred_region
        %s351 = ssub.s32 %s16, 2
        // Predicated region
        $region49: #{tpu_custom_call.1} parent=47 // pred_check
          %p352 = pneg %p137
        $region50: #{tpu_custom_call.1} parent=47 // pred_check_branch
          %354 = sbr.rel (%p352) target = $region52
        $region51: #{tpu_custom_call.1} parent=47 // pred_region
          %s355 = sand.u32 %s122, 1
          %s356 = scalar_lea.sflag [#allocation4], %s355
          %s357 = sand.u32 %s122, 1
          %s358 = smul.addr %s357, 8
          %s359 = scalar_lea.vmem [#allocation7], %s358
          %360 = dma.done %s356, 128
        $region52: #{tpu_custom_call.1} parent=47 // pred_fallthru
          _
      $region48: #{tpu_custom_call.1} parent=5 // pred_fallthru
        _
    $region6: #{tpu_custom_call.1} parent=1 // loop_footer
      %s20 = sadd.s32 1, %s16
    $region7: #{tpu_custom_call.1} parent=1 // loop_footer_branch
      %15 = sbr.rel target = $region3
    $region8: #{tpu_custom_call.1} parent=1 // loop_exit
      _
    %361 = vsyncpa [#allocation3], 1
    %s362 = scalar_lea.sflag [#allocation3], 1
    %363 = vsyncpa %s362, 1
    %364 = vsyncpa [#allocation6], 1
    %365 = vsyncpa [#allocation4], 1
    %s366 = scalar_lea.sflag [#allocation4], 1
    %367 = vsyncpa %s366, 1

</llo_original>
